<compile_context>
chip_gen: v5e
topology: v5e:2x2
jax: 0.10.0
libtpu: 0.0.40
codegen_flags: <defaults>
</compile_context>

<pallas_src>
import math
import numpy as np

import jax
import jax.numpy as jnp
from jax.experimental import pallas as pl
from jax.experimental.pallas import tpu as pltpu

KSIZE = 3


def _dct_filter_bank(n: int = 3) -> np.ndarray:
    """DCT-II filter bank used by Harm2d (level=None, DC=True, L1-normalized)."""
    nf = n * n
    bank = np.zeros((nf, n, n), dtype=np.float32)
    m = 0
    for i in range(n):
        for j in range(n):
            for x in range(n):
                for y in range(n):
                    bank[m, x, y] = (math.cos(math.pi * (x + 0.5) * i / n)
                                     * math.cos(math.pi * (y + 0.5) * j / n))
            bank[m] /= np.sum(np.abs(bank[m]))
            m += 1
    return bank  # (nf, n, n)


def _build_banded_weights(w_oihw, width: int) -> np.ndarray:
    """(Cout, Cin, 3, 3) conv filter -> (3*width*Cin, width*Cout) block-banded matrix.

    R[kh, wi*Cin + ci, wo*Cout + co] = W[co, ci, kh, wi - wo + 1]  for |wi - wo| <= 1,
    else 0; the 3 kh tap matrices are stacked along the contraction axis.

    With X[h, w*Cin + ci] = x[ci, h, w], X zero-padded by one row on top/bottom along H,
    and L[h] = concat(Xpad[h], Xpad[h+1], Xpad[h+2]) along lanes:
       out[h, wo*Cout + co] = L[h] @ R
    reproduces the 3x3 conv with padding=1 exactly (W-direction padding is implicit in
    the band structure; H-direction padding via the two zero rows).
    """
    w = np.asarray(w_oihw, np.float32)
    cout, cin, kh, kw = w.shape
    R = np.zeros((kh, width * cin, width * cout), np.float32)
    for dh in range(kh):
        for dw in range(kw):
            tap = w[:, :, dh, dw].T                      # (Cin, Cout)
            for wo in range(width):
                wi = wo + dw - 1
                if 0 <= wi < width:
                    R[dh, wi * cin:(wi + 1) * cin, wo * cout:(wo + 1) * cout] = tap
    return R.reshape(kh * width * cin, width * cout)


def basic_block_kernel(x_ref, r1_ref, r2_ref, b1_ref, b2_ref, out_ref):
    """Fused conv3x3 -> bn -> relu -> conv3x3 -> bn -> +identity -> relu (one image).

    x_ref   : (1, H, W*C)        lane-dense (w, c)-folded image, f32
    r*_ref  : (3*W*C, W*C)       block-banded conv weights (BN scale folded in), bf16
    b*_ref  : (1, W*C)           folded BatchNorm shift (per-channel, tiled over w), f32
    out_ref : (1, H, W*C)        f32
    """
    H, WC = x_ref.shape[1], x_ref.shape[2]
    x = x_ref[0]                                         # (H, WC) f32
    zrow = jnp.zeros((1, WC), jnp.float32)

    def conv3x3(src_f32, r_ref):
        # Pad one zero row on top/bottom (H-direction conv padding), then build the
        # 3-tap im2col slab along lanes and do a single MXU matmul with K = 3*WC.
        srcp = jnp.concatenate([zrow, src_f32, zrow], axis=0)        # (H+2, WC) f32
        lhs = jnp.concatenate(
            [srcp[0:H, :], srcp[1:H + 1, :], srcp[2:H + 2, :]],
            axis=1).astype(jnp.bfloat16)                              # (H, 3*WC) bf16
        return jnp.dot(lhs, r_ref[...],                               # (3*WC, WC) bf16
                       preferred_element_type=jnp.float32)            # (H, WC) f32

    # harm1 + bn1 (scale pre-folded into r1) + relu
    out1 = jnp.maximum(conv3x3(x, r1_ref) + b1_ref[...], 0.0)

    # harm2 + bn2 (scale pre-folded into r2)
    out2 = conv3x3(out1, r2_ref) + b2_ref[...]

    # residual add (identity = unpadded x, read directly) + final relu
    out_ref[0] = jnp.maximum(out2 + x, 0.0)


def basic_block_forward(x_nchw, w1_oihw, w2_oihw, bn1_scale, bn1_shift,
                        bn2_scale, bn2_shift):
    """Wrapper: NCHW -> (N, H, W*C) folded layout, banded weight build, pallas_call."""
    N, C, H, W = x_nchw.shape
    WC = W * C

    # fold (w, c) onto the lane axis (one transpose in / out per block call)
    x_flat = jnp.transpose(x_nchw, (0, 2, 3, 1)).reshape(N, H, WC).astype(jnp.float32)

    # parameter-side transforms (done once per weight set, like the DCT composition):
    # fold BN scale into the conv output channels, then build block-banded matrices.
    s1_np = np.asarray(bn1_scale, np.float32).reshape(-1, 1, 1, 1)
    s2_np = np.asarray(bn2_scale, np.float32).reshape(-1, 1, 1, 1)
    w1_scaled = np.asarray(w1_oihw, np.float32) * s1_np
    w2_scaled = np.asarray(w2_oihw, np.float32) * s2_np
    r1 = jnp.asarray(_build_banded_weights(w1_scaled, W), jnp.bfloat16)   # (3*WC, WC)
    r2 = jnp.asarray(_build_banded_weights(w2_scaled, W), jnp.bfloat16)

    def tile_shift(p):   # per-channel (C,) -> (1, W*C) matching the folded lane layout
        return jnp.tile(jnp.asarray(p, jnp.float32), W).reshape(1, WC)

    b1, b2 = tile_shift(bn1_shift), tile_shift(bn2_shift)

    flops = 2 * N * (2 * H * (KSIZE * WC) * WC)          # 2 convs x (H, 3WC)@(3WC, WC)
    bytes_accessed = (2 * N * H * WC) * 4 + 2 * KSIZE * WC * WC * 2 + 2 * WC * 4
    cost = pl.CostEstimate(flops=flops, transcendentals=0, bytes_accessed=bytes_accessed)

    out_flat = pl.pallas_call(
        basic_block_kernel,
        out_shape=jax.ShapeDtypeStruct((N, H, WC), jnp.float32),
        grid=(N,),
        in_specs=[
            pl.BlockSpec((1, H, WC), lambda n: (n, 0, 0)),            # x (per-image block)
            pl.BlockSpec((KSIZE * WC, WC), lambda n: (0, 0)),         # r1 (resident)
            pl.BlockSpec((KSIZE * WC, WC), lambda n: (0, 0)),         # r2 (resident)
            pl.BlockSpec((1, WC), lambda n: (0, 0)),                  # b1
            pl.BlockSpec((1, WC), lambda n: (0, 0)),                  # b2
        ],
        out_specs=pl.BlockSpec((1, H, WC), lambda n: (n, 0, 0)),
        compiler_params=pltpu.CompilerParams(
            dimension_semantics=("parallel",),
            vmem_limit_bytes=32 * 1024 * 1024),
        cost_estimate=cost,
    )(x_flat, r1, r2, b1, b2)

    # back to PyTorch's NCHW convention
    return jnp.transpose(out_flat.reshape(N, H, W, C), (0, 3, 1, 2))


def reference_forward(x_nchw, w1_oihw, w2_oihw, s1, b1, s2, b2):
    """Plain-JAX reference (NCHW, like PyTorch) for correctness checking."""
    dn = ('NCHW', 'OIHW', 'NCHW')

    def conv(x, w):
        return jax.lax.conv_general_dilated(
            x, w, window_strides=(1, 1), padding=((1, 1), (1, 1)),
            dimension_numbers=dn, precision=jax.lax.Precision.HIGHEST)

    out = conv(x_nchw, w1_oihw)
    out = out * s1.reshape(1, -1, 1, 1) + b1.reshape(1, -1, 1, 1)
    out = jnp.maximum(out, 0.0)
    out = conv(out, w2_oihw)
    out = out * s2.reshape(1, -1, 1, 1) + b2.reshape(1, -1, 1, 1)
    return jnp.maximum(out + x_nchw, 0.0)


if __name__ == "__main__":
    # Small shapes consistent with the module: BasicBlock(planes=planes), stride=1.
    # planes * W = 128 -> exactly one 128-lane tile per folded row.
    N, planes, H, W = 2, 8, 16, 16

    key = jax.random.PRNGKey(0)
    kx, ka1, ka2, kg1, kb1, km1, kv1, kg2, kb2, km2, kv2 = jax.random.split(key, 11)

    # Input (PyTorch NCHW convention).
    x = jax.random.normal(kx, (N, planes, H, W), jnp.float32)

    # Harm2d parameters: fixed DCT bank + learnable mixing weights alpha (no, ni, nf).
    dct = jnp.asarray(_dct_filter_bank(KSIZE))                 # (9, 3, 3)
    nf = dct.shape[0]
    std = math.sqrt(2.0 / (planes * nf))                       # kaiming_normal_, fan_out, relu
    alpha1 = std * jax.random.normal(ka1, (planes, planes, nf), jnp.float32)
    alpha2 = std * jax.random.normal(ka2, (planes, planes, nf), jnp.float32)

    # Effective conv filters: W[o, i, kh, kw] = sum_f alpha[o, i, f] * dct[f, kh, kw]
    w1_oihw = jnp.einsum('oif,fhw->oihw', alpha1, dct)
    w2_oihw = jnp.einsum('oif,fhw->oihw', alpha2, dct)

    # BatchNorm2d params (eval mode), deterministic but non-trivial.
    eps = 1e-5
    gamma1 = 1.0 + 0.1 * jax.random.normal(kg1, (planes,), jnp.float32)
    beta1 = 0.1 * jax.random.normal(kb1, (planes,), jnp.float32)
    mean1 = 0.1 * jax.random.normal(km1, (planes,), jnp.float32)
    var1 = 1.0 + 0.1 * jax.random.uniform(kv1, (planes,), jnp.float32)
    gamma2 = 1.0 + 0.1 * jax.random.normal(kg2, (planes,), jnp.float32)
    beta2 = 0.1 * jax.random.normal(kb2, (planes,), jnp.float32)
    mean2 = 0.1 * jax.random.normal(km2, (planes,), jnp.float32)
    var2 = 1.0 + 0.1 * jax.random.uniform(kv2, (planes,), jnp.float32)

    s1 = gamma1 / jnp.sqrt(var1 + eps)
    b1 = beta1 - mean1 * s1
    s2 = gamma2 / jnp.sqrt(var2 + eps)
    b2 = beta2 - mean2 * s2

    out = basic_block_forward(x, w1_oihw, w2_oihw, s1, b1, s2, b2)
    out = jax.block_until_ready(out)

    ref = reference_forward(x, w1_oihw, w2_oihw, s1, b1, s2, b2)
    assert out.shape == (N, planes, H, W)
    # bf16 MXU operands (f32 accumulation) -> slightly looser tolerance than pure f32.
    assert bool(jnp.allclose(out, ref, atol=3e-2, rtol=3e-2)), (
        f"max abs diff {float(jnp.max(jnp.abs(out - ref)))}")

    print("KERNEL_OK")
</pallas_src>

<mosaic_0001>
module attributes {stable_mosaic.version = 11 : i64} {
  func.func @basic_block_kernel(%arg0: i32, %arg1: memref<1x16x128xf32, #tpu.memory_space<vmem>>, %arg2: memref<384x128xbf16, #tpu.memory_space<vmem>>, %arg3: memref<384x128xbf16, #tpu.memory_space<vmem>>, %arg4: memref<1x128xf32, #tpu.memory_space<vmem>>, %arg5: memref<1x128xf32, #tpu.memory_space<vmem>>, %arg6: memref<1x16x128xf32, #tpu.memory_space<vmem>>) attributes {dimension_semantics = [#tpu.dimension_semantics<parallel>], iteration_bounds = array<i64: 2>, scalar_prefetch = 0 : i64, scratch_operands = 0 : i64, tpu.core_type = #tpu.core_type<tc>, window_params = [{transform_indices = @transform_0, window_bounds = array<i64: 1, 16, 128>}, {pipeline_mode = #tpu.pipeline_mode<synchronous>, transform_indices = @transform_1, window_bounds = array<i64: 384, 128>}, {pipeline_mode = #tpu.pipeline_mode<synchronous>, transform_indices = @transform_2, window_bounds = array<i64: 384, 128>}, {pipeline_mode = #tpu.pipeline_mode<synchronous>, transform_indices = @transform_3, window_bounds = array<i64: 1, 128>}, {pipeline_mode = #tpu.pipeline_mode<synchronous>, transform_indices = @transform_4, window_bounds = array<i64: 1, 128>}, {transform_indices = @transform_5, window_bounds = array<i64: 1, 16, 128>}]} {
    %c0 = arith.constant 0 : index
    %c0_0 = arith.constant 0 : index
    %c0_1 = arith.constant 0 : index
    %0 = vector.load %arg1[%c0, %c0_0, %c0_1] : memref<1x16x128xf32, #tpu.memory_space<vmem>>, vector<1x16x128xf32>
    %1 = vector.shape_cast %0 : vector<1x16x128xf32> to vector<16x128xf32>
    %cst = arith.constant 0.000000e+00 : f32
    %2 = vector.broadcast %cst : f32 to vector<1x128xf32>
    %3 = tpu.concatenate %2, %1, %2 in 0 : vector<1x128xf32>, vector<16x128xf32>, vector<1x128xf32> -> vector<18x128xf32>
    %4 = vector.extract_strided_slice %3 {offsets = [0, 0], sizes = [16, 128], strides = [1, 1]} : vector<18x128xf32> to vector<16x128xf32>
    %5 = vector.extract_strided_slice %3 {offsets = [1, 0], sizes = [16, 128], strides = [1, 1]} : vector<18x128xf32> to vector<16x128xf32>
    %6 = vector.extract_strided_slice %3 {offsets = [2, 0], sizes = [16, 128], strides = [1, 1]} : vector<18x128xf32> to vector<16x128xf32>
    %7 = tpu.concatenate %4, %5, %6 in 1 : vector<16x128xf32>, vector<16x128xf32>, vector<16x128xf32> -> vector<16x384xf32>
    %8 = arith.truncf %7 : vector<16x384xf32> to vector<16x384xbf16>
    %c0_2 = arith.constant 0 : index
    %c0_3 = arith.constant 0 : index
    %9 = vector.load %arg2[%c0_2, %c0_3] : memref<384x128xbf16, #tpu.memory_space<vmem>>, vector<384x128xbf16>
    %cst_4 = arith.constant dense<0.000000e+00> : vector<16x128xf32>
    %10 = tpu.matmul %8, %9, %cst_4 {dimension_numbers = #tpu.dot_dimension_numbers<[1], [0], [0], [1], [0, 0, 1, 1], [], []>} : vector<16x384xbf16>, vector<384x128xbf16>, vector<16x128xf32> -> vector<16x128xf32>
    %c0_5 = arith.constant 0 : index
    %c0_6 = arith.constant 0 : index
    %11 = vector.load %arg4[%c0_5, %c0_6] : memref<1x128xf32, #tpu.memory_space<vmem>>, vector<1x128xf32>
    %12 = vector.broadcast %11 : vector<1x128xf32> to vector<16x128xf32>
    %13 = arith.addf %10, %12 : vector<16x128xf32>
    %cst_7 = arith.constant 0.000000e+00 : f32
    %14 = vector.broadcast %cst_7 : f32 to vector<16x128xf32>
    %15 = arith.maximumf %13, %14 : vector<16x128xf32>
    %16 = tpu.concatenate %2, %15, %2 in 0 : vector<1x128xf32>, vector<16x128xf32>, vector<1x128xf32> -> vector<18x128xf32>
    %17 = vector.extract_strided_slice %16 {offsets = [0, 0], sizes = [16, 128], strides = [1, 1]} : vector<18x128xf32> to vector<16x128xf32>
    %18 = vector.extract_strided_slice %16 {offsets = [1, 0], sizes = [16, 128], strides = [1, 1]} : vector<18x128xf32> to vector<16x128xf32>
    %19 = vector.extract_strided_slice %16 {offsets = [2, 0], sizes = [16, 128], strides = [1, 1]} : vector<18x128xf32> to vector<16x128xf32>
    %20 = tpu.concatenate %17, %18, %19 in 1 : vector<16x128xf32>, vector<16x128xf32>, vector<16x128xf32> -> vector<16x384xf32>
    %21 = arith.truncf %20 : vector<16x384xf32> to vector<16x384xbf16>
    %c0_8 = arith.constant 0 : index
    %c0_9 = arith.constant 0 : index
    %22 = vector.load %arg3[%c0_8, %c0_9] : memref<384x128xbf16, #tpu.memory_space<vmem>>, vector<384x128xbf16>
    %cst_10 = arith.constant dense<0.000000e+00> : vector<16x128xf32>
    %23 = tpu.matmul %21, %22, %cst_10 {dimension_numbers = #tpu.dot_dimension_numbers<[1], [0], [0], [1], [0, 0, 1, 1], [], []>} : vector<16x384xbf16>, vector<384x128xbf16>, vector<16x128xf32> -> vector<16x128xf32>
    %c0_11 = arith.constant 0 : index
    %c0_12 = arith.constant 0 : index
    %24 = vector.load %arg5[%c0_11, %c0_12] : memref<1x128xf32, #tpu.memory_space<vmem>>, vector<1x128xf32>
    %25 = vector.broadcast %24 : vector<1x128xf32> to vector<16x128xf32>
    %26 = arith.addf %23, %25 : vector<16x128xf32>
    %27 = arith.addf %26, %1 : vector<16x128xf32>
    %cst_13 = arith.constant 0.000000e+00 : f32
    %28 = vector.broadcast %cst_13 : f32 to vector<16x128xf32>
    %29 = arith.maximumf %27, %28 : vector<16x128xf32>
    %c0_14 = arith.constant 0 : index
    %c0_15 = arith.constant 0 : index
    %c0_16 = arith.constant 0 : index
    %30 = vector.load %arg6[%c0_14, %c0_15, %c0_16] : memref<1x16x128xf32, #tpu.memory_space<vmem>>, vector<1x16x128xf32>
    %31 = vector.shape_cast %30 : vector<1x16x128xf32> to vector<16x128xf32>
    %32 = vector.shape_cast %29 : vector<16x128xf32> to vector<1x16x128xf32>
    tpu.vector_store %arg6[%c0_14, %c0_15, %c0_16], %32 {strides = array<i32>} : memref<1x16x128xf32, #tpu.memory_space<vmem>>, vector<1x16x128xf32>,
    return
  }
  func.func @transform_0(%arg0: i32) -> (i32, i32, i32) {
    %c0_i32 = arith.constant 0 : i32
    %c0_i32_0 = arith.constant 0 : i32
    %c0_i32_1 = arith.constant 0 : i32
    return %arg0, %c0_i32, %c0_i32_0 : i32, i32, i32
  }
  func.func @transform_1(%arg0: i32) -> (i32, i32) {
    %c0_i32 = arith.constant 0 : i32
    %c0_i32_0 = arith.constant 0 : i32
    %c0_i32_1 = arith.constant 0 : i32
    return %c0_i32, %c0_i32_0 : i32, i32
  }
  func.func @transform_2(%arg0: i32) -> (i32, i32) {
    %c0_i32 = arith.constant 0 : i32
    %c0_i32_0 = arith.constant 0 : i32
    %c0_i32_1 = arith.constant 0 : i32
    return %c0_i32, %c0_i32_0 : i32, i32
  }
  func.func @transform_3(%arg0: i32) -> (i32, i32) {
    %c0_i32 = arith.constant 0 : i32
    %c0_i32_0 = arith.constant 0 : i32
    %c0_i32_1 = arith.constant 0 : i32
    return %c0_i32, %c0_i32_0 : i32, i32
  }
  func.func @transform_4(%arg0: i32) -> (i32, i32) {
    %c0_i32 = arith.constant 0 : i32
    %c0_i32_0 = arith.constant 0 : i32
    %c0_i32_1 = arith.constant 0 : i32
    return %c0_i32, %c0_i32_0 : i32, i32
  }
  func.func @transform_5(%arg0: i32) -> (i32, i32, i32) {
    %c0_i32 = arith.constant 0 : i32
    %c0_i32_0 = arith.constant 0 : i32
    %c0_i32_1 = arith.constant 0 : i32
    return %arg0, %c0_i32, %c0_i32_0 : i32, i32, i32
  }
}

</mosaic_0001>

<llo_original>
// kernel: tpu_custom_call.1
$region0: #{tpu_custom_call.1}
  #allocation0 [shape = 'u32[]', space=smem, size = 0x4, offset = 0x4, fixed_abs, tag = 'smem constant byte address 0x4 - core index']
  #allocation1 [shape = 'u32[72,128]{1,0:T(1,128)}', space=vmem, size = 0x9000, scoped, tag = 'internal scratch']
  %s0 = inlined_call_operand.hbm [shape: f32[2,16,128], index: 0, kind: input, shape index: {}]
  %s1 = inlined_call_operand.hbm [shape: bf16[384,128], index: 1, kind: input, shape index: {}]
  %s2 = inlined_call_operand.hbm [shape: bf16[384,128], index: 2, kind: input, shape index: {}]
  %s3 = inlined_call_operand.vmem [shape: f32[1,128], index: 3, kind: input, shape index: {}]
  %s4 = inlined_call_operand.vmem [shape: f32[1,128], index: 4, kind: input, shape index: {}]
  %s5 = inlined_call_operand.hbm [shape: f32[2,16,128], index: 5, kind: output, shape index: {}]
  %s6 = sld [smem:[#allocation0]]
  $region65: #{tpu_custom_call.1} parent=0
    _
  %s8 = ssub.s32 1, %s6
  %s9 = scalar_select 0, %s8, %s6
  $region1: #{tpu_custom_call.1} parent=0
    #allocation2 [shape = 'u8[16384]{0}', space=vmem, size = 0x4000, scoped, tag = 'input window, operand 0']
    #allocation3 [shape = 's32[2]{0}', space=sflag, size = 0x8, scoped, tag = 'scoped memory for tpu_custom_call.1']
    #allocation4 [shape = 's32[2]{0}', space=sflag, size = 0x8, scoped, tag = 'scoped memory for tpu_custom_call.1']
    #allocation5 [shape = 'u8[98304]{0}', space=vmem, size = 0x18000, scoped, tag = 'input window, operand 1, single buffered']
    #allocation6 [shape = 's32[1]{0}', space=sflag, size = 0x4, scoped, tag = 'scoped memory for tpu_custom_call.1']
    #allocation7 [shape = 'u8[98304]{0}', space=vmem, size = 0x18000, scoped, tag = 'input window, operand 2, single buffered']
    #allocation8 [shape = 'u8[16384]{0}', space=vmem, size = 0x4000, scoped, tag = 'output window, operand 0']
    %10 = vsyncpa [#allocation3], 0
    %s11 = scalar_lea.sflag [#allocation3], 1
    %12 = vsyncpa %s11, 0
    %13 = vsyncpa [#allocation6], 0
    %14 = vsyncpa [#allocation4], 0
    %s15 = scalar_lea.sflag [#allocation4], 1
    %16 = vsyncpa %s15, 0
    loop: start=0, step=1, limit=4
    $region2: #{tpu_custom_call.1} parent=1 // loop_pre_header
      _
    $region3: #{tpu_custom_call.1} parent=1 // loop_header
      %s18 = sphi 0, %s22
      %p19 = scmp.ge.s32.totalorder %s18, 4
      %s28 = sphi 0, %s30
      %s31 = sphi 0, %s28
      %s32 = sphi 0, %s31
      %s48 = sphi 0, %s32
      %s52 = sphi 0, %s52
      %s54 = sphi 0, %s52
      %s55 = sphi 0, %s54
      %s69 = sphi 0, %s55
      %s73 = sphi 0, %s73
      %s75 = sphi 0, %s73
      %s76 = sphi 0, %s75
      %s90 = sphi 0, %s76
      %s94 = sphi 0, %s94
      %s96 = sphi 0, %s94
      %s97 = sphi 0, %s96
      %s111 = sphi 0, %s97
      %s115 = sphi 0, %s115
      %s117 = sphi 0, %s115
      %s118 = sphi 0, %s117
      %s132 = sphi 0, %s118
      %s138 = sphi 0, %s140
      %s141 = sphi 0, %s138
      %s142 = sphi 0, %s141
      %s158 = sphi 0, %s142
    $region4: #{tpu_custom_call.1} parent=1 // loop_header_branch
      %21 = sbr.rel (%p19) target = $region8
    $region5: #{tpu_custom_call.1} parent=1 // loop_body
      %s23 = ssub.s32 %s18, 1
      %s24 = ssub.s32 %s18, 2
      %s25 = sadd.s32 %s18, 1
      %s26 = ssub.s32 %s18, %s25
      %p27 = scmp.eq.s32.totalorder %s26, 0
      %s29 = sadd.s32 %s28, 1
      %s30 = scalar_select %p27, %s28, %s29
      %p33 = pneg %p27
      %p34 = scmp.eq.s32.totalorder %s18, 1
      %p35 = por %p33, %p34
      %p36 = scmp.ne.s32.totalorder %s28, %s31
      %p37 = scmp.eq.s32.totalorder %s18, 0
      %p38 = por %p36, %p37
      %p39 = scmp.ne.s32.totalorder %s28, %s31
      %p40 = scmp.eq.s32.totalorder %s23, 1
      %p41 = por %p39, %p40
      %p42 = scmp.ne.s32.totalorder %s31, %s32
      %p43 = scmp.eq.s32.totalorder %s23, 0
      %p44 = por %p42, %p43
      %p45 = scmp.ne.s32.totalorder %s31, %s32
      %p46 = scmp.eq.s32.totalorder %s24, 1
      %p47 = por %p45, %p46
      %p49 = scmp.ne.s32.totalorder %s32, %s48
      %p50 = scmp.eq.s32.totalorder %s24, 0
      %p51 = por %p49, %p50
      %s53 = sadd.s32 %s52, 1
      %p56 = scmp.eq.s32.totalorder %s18, 1
      %p57 = scmp.ne.s32.totalorder %s52, %s54
      %p58 = scmp.eq.s32.totalorder %s18, 0
      %p59 = por %p57, %p58
      %p60 = scmp.ne.s32.totalorder %s52, %s54
      %p61 = scmp.eq.s32.totalorder %s23, 1
      %p62 = por %p60, %p61
      %p63 = scmp.ne.s32.totalorder %s54, %s55
      %p64 = scmp.eq.s32.totalorder %s23, 0
      %p65 = por %p63, %p64
      %p66 = scmp.ne.s32.totalorder %s54, %s55
      %p67 = scmp.eq.s32.totalorder %s24, 1
      %p68 = por %p66, %p67
      %p70 = scmp.ne.s32.totalorder %s55, %s69
      %p71 = scmp.eq.s32.totalorder %s24, 0
      %p72 = por %p70, %p71
      %s74 = sadd.s32 %s73, 1
      %p77 = scmp.eq.s32.totalorder %s18, 1
      %p78 = scmp.ne.s32.totalorder %s73, %s75
      %p79 = scmp.eq.s32.totalorder %s18, 0
      %p80 = por %p78, %p79
      %p81 = scmp.ne.s32.totalorder %s73, %s75
      %p82 = scmp.eq.s32.totalorder %s23, 1
      %p83 = por %p81, %p82
      %p84 = scmp.ne.s32.totalorder %s75, %s76
      %p85 = scmp.eq.s32.totalorder %s23, 0
      %p86 = por %p84, %p85
      %p87 = scmp.ne.s32.totalorder %s75, %s76
      %p88 = scmp.eq.s32.totalorder %s24, 1
      %p89 = por %p87, %p88
      %p91 = scmp.ne.s32.totalorder %s76, %s90
      %p92 = scmp.eq.s32.totalorder %s24, 0
      %p93 = por %p91, %p92
      %s95 = sadd.s32 %s94, 1
      %p98 = scmp.eq.s32.totalorder %s18, 1
      %p99 = scmp.ne.s32.totalorder %s94, %s96
      %p100 = scmp.eq.s32.totalorder %s18, 0
      %p101 = por %p99, %p100
      %p102 = scmp.ne.s32.totalorder %s94, %s96
      %p103 = scmp.eq.s32.totalorder %s23, 1
      %p104 = por %p102, %p103
      %p105 = scmp.ne.s32.totalorder %s96, %s97
      %p106 = scmp.eq.s32.totalorder %s23, 0
      %p107 = por %p105, %p106
      %p108 = scmp.ne.s32.totalorder %s96, %s97
      %p109 = scmp.eq.s32.totalorder %s24, 1
      %p110 = por %p108, %p109
      %p112 = scmp.ne.s32.totalorder %s97, %s111
      %p113 = scmp.eq.s32.totalorder %s24, 0
      %p114 = por %p112, %p113
      %s116 = sadd.s32 %s115, 1
      %p119 = scmp.eq.s32.totalorder %s18, 1
      %p120 = scmp.ne.s32.totalorder %s115, %s117
      %p121 = scmp.eq.s32.totalorder %s18, 0
      %p122 = por %p120, %p121
      %p123 = scmp.ne.s32.totalorder %s115, %s117
      %p124 = scmp.eq.s32.totalorder %s23, 1
      %p125 = por %p123, %p124
      %p126 = scmp.ne.s32.totalorder %s117, %s118
      %p127 = scmp.eq.s32.totalorder %s23, 0
      %p128 = por %p126, %p127
      %p129 = scmp.ne.s32.totalorder %s117, %s118
      %p130 = scmp.eq.s32.totalorder %s24, 1
      %p131 = por %p129, %p130
      %p133 = scmp.ne.s32.totalorder %s118, %s132
      %p134 = scmp.eq.s32.totalorder %s24, 0
      %p135 = por %p133, %p134
      %s136 = ssub.s32 %s18, %s25
      %p137 = scmp.eq.s32.totalorder %s136, 0
      %s139 = sadd.s32 %s138, 1
      %s140 = scalar_select %p137, %s138, %s139
      %p143 = pneg %p137
      %p144 = scmp.eq.s32.totalorder %s18, 1
      %p145 = por %p143, %p144
      %p146 = scmp.ne.s32.totalorder %s138, %s141
      %p147 = scmp.eq.s32.totalorder %s18, 0
      %p148 = por %p146, %p147
      %p149 = scmp.ne.s32.totalorder %s138, %s141
      %p150 = scmp.eq.s32.totalorder %s23, 1
      %p151 = por %p149, %p150
      %p152 = scmp.ne.s32.totalorder %s141, %s142
      %p153 = scmp.eq.s32.totalorder %s23, 0
      %p154 = por %p152, %p153
      %p155 = scmp.ne.s32.totalorder %s141, %s142
      %p156 = scmp.eq.s32.totalorder %s24, 1
      %p157 = por %p155, %p156
      %p159 = scmp.ne.s32.totalorder %s142, %s158
      %p160 = scmp.eq.s32.totalorder %s24, 0
      %p161 = por %p159, %p160
      %p162 = scmp.le.s32.totalorder 1, %s18
      %p163 = scmp.lt.s32.totalorder %s18, 3
      %p164 = pnand %p162, %p163
      %p165 = pneg %p164
      // Predicated region
      $region9: #{tpu_custom_call.1} parent=5 // pred_check
        _
      $region10: #{tpu_custom_call.1} parent=5 // pred_check_branch
        %167 = sbr.rel (%p164) target = $region12
      $region11: #{tpu_custom_call.1} parent=5 // pred_region
        %s168 = ssub.s32 %s18, 1
        // Predicated region
        $region13: #{tpu_custom_call.1} parent=11 // pred_check
          %p169 = pneg %p65
        $region14: #{tpu_custom_call.1} parent=11 // pred_check_branch
          %171 = sbr.rel (%p169) target = $region16
        $region15: #{tpu_custom_call.1} parent=11 // pred_region
          %173 = vsyncadd [#allocation6], 0
          %s174 = sshll.u32 %s1, 4
          %s175 = int_to_ptr.hbm [resolvable:$true] %s174
          %s176 = sshll.u32 [#allocation5], 4
          %s177 = int_to_ptr.vmem [resolvable:$true] %s176
          %182 = dma.hbm_to_vmem [thread:$0]  %s175, 3072, %s177, [#allocation6], 64, 64, 4
        $region16: #{tpu_custom_call.1} parent=11 // pred_fallthru
          _
        // Predicated region
        $region17: #{tpu_custom_call.1} parent=11 // pred_check
          %p183 = pneg %p86
        $region18: #{tpu_custom_call.1} parent=11 // pred_check_branch
          %185 = sbr.rel (%p183) target = $region20
        $region19: #{tpu_custom_call.1} parent=11 // pred_region
          %187 = vsyncadd [#allocation6], 0
          %s188 = sshll.u32 %s2, 4
          %s189 = int_to_ptr.hbm [resolvable:$true] %s188
          %s190 = sshll.u32 [#allocation7], 4
          %s191 = int_to_ptr.vmem [resolvable:$true] %s190
          %196 = dma.hbm_to_vmem [thread:$0]  %s189, 3072, %s191, [#allocation6], 64, 64, 4
        $region20: #{tpu_custom_call.1} parent=11 // pred_fallthru
          _
        // Predicated region
        $region21: #{tpu_custom_call.1} parent=11 // pred_check
          %p197 = pneg %p107
        $region22: #{tpu_custom_call.1} parent=11 // pred_check_branch
          %199 = sbr.rel (%p197) target = $region24
        $region23: #{tpu_custom_call.1} parent=11 // pred_region
          _
        $region24: #{tpu_custom_call.1} parent=11 // pred_fallthru
          _
        // Predicated region
        $region25: #{tpu_custom_call.1} parent=11 // pred_check
          %p200 = pneg %p128
        $region26: #{tpu_custom_call.1} parent=11 // pred_check_branch
          %202 = sbr.rel (%p200) target = $region28
        $region27: #{tpu_custom_call.1} parent=11 // pred_region
          _
        $region28: #{tpu_custom_call.1} parent=11 // pred_fallthru
          _
      $region12: #{tpu_custom_call.1} parent=5 // pred_fallthru
        _
      %p203 = scmp.lt.s32.totalorder %s18, 2
      // Predicated region
      $region29: #{tpu_custom_call.1} parent=5 // pred_check
        %p204 = pneg %p203
      $region30: #{tpu_custom_call.1} parent=5 // pred_check_branch
        %206 = sbr.rel (%p204) target = $region32
      $region31: #{tpu_custom_call.1} parent=5 // pred_region
        // Predicated region
        $region33: #{tpu_custom_call.1} parent=31 // pred_check
          %p207 = pneg %p38
        $region34: #{tpu_custom_call.1} parent=31 // pred_check_branch
          %209 = sbr.rel (%p207) target = $region36
        $region35: #{tpu_custom_call.1} parent=31 // pred_region
          %s210 = sand.u32 %s28, 1
          %s211 = scalar_lea.sflag [#allocation3], %s210
          %s212 = sand.u32 %s28, 1
          %s213 = smul.addr %s212, 16
          %s214 = scalar_lea.vmem [#allocation2], %s213
          %216 = vsyncadd %s211, 0
          %s217 = smul.addr %s18, 2
          %s218 = smul.addr %s217, 8
          %s219 = scalar_lea.hbm %s0, %s218
          %s220 = sshll.u32 %s219, 4
          %s221 = int_to_ptr.hbm [resolvable:$true] %s220
          %s222 = sshll.u32 %s214, 4
          %s223 = int_to_ptr.vmem [resolvable:$true] %s222
          %228 = dma.hbm_to_vmem [thread:$0]  %s221, 256, %s223, %s211, 128, 128, 8
        $region36: #{tpu_custom_call.1} parent=31 // pred_fallthru
          _
      $region32: #{tpu_custom_call.1} parent=5 // pred_fallthru
        _
      %p229 = scmp.le.s32.totalorder 1, %s18
      %p230 = scmp.lt.s32.totalorder %s18, 3
      %p231 = pnand %p229, %p230
      %p232 = pneg %p231
      // Predicated region
      $region37: #{tpu_custom_call.1} parent=5 // pred_check
        _
      $region38: #{tpu_custom_call.1} parent=5 // pred_check_branch
        %234 = sbr.rel (%p231) target = $region40
      $region39: #{tpu_custom_call.1} parent=5 // pred_region
        %s235 = ssub.s32 %s18, 1
        %s236 = sand.u32 %s31, 1
        %s237 = scalar_lea.sflag [#allocation3], %s236
        %s238 = sand.u32 %s31, 1
        %s239 = smul.addr %s238, 16
        %s240 = scalar_lea.vmem [#allocation2], %s239
        // Predicated region
        $region41: #{tpu_custom_call.1} parent=39 // pred_check
          %p241 = pneg %p44
        $region42: #{tpu_custom_call.1} parent=39 // pred_check_branch
          %243 = sbr.rel (%p241) target = $region44
        $region43: #{tpu_custom_call.1} parent=39 // pred_region
          %245 = dma.done %s237, 256
        $region44: #{tpu_custom_call.1} parent=39 // pred_fallthru
          _
        // Predicated region
        $region45: #{tpu_custom_call.1} parent=39 // pred_check
          %p246 = pneg %p65
        $region46: #{tpu_custom_call.1} parent=39 // pred_check_branch
          %248 = sbr.rel (%p246) target = $region48
        $region47: #{tpu_custom_call.1} parent=39 // pred_region
          %250 = dma.done [#allocation6], 3072
        $region48: #{tpu_custom_call.1} parent=39 // pred_fallthru
          _
        // Predicated region
        $region49: #{tpu_custom_call.1} parent=39 // pred_check
          %p251 = pneg %p86
        $region50: #{tpu_custom_call.1} parent=39 // pred_check_branch
          %253 = sbr.rel (%p251) target = $region52
        $region51: #{tpu_custom_call.1} parent=39 // pred_region
          %255 = dma.done [#allocation6], 3072
        $region52: #{tpu_custom_call.1} parent=39 // pred_fallthru
          _
        %s256 = sand.u32 %s31, 1
        %s257 = scalar_lea.sflag [#allocation3], %s256
        %s258 = sand.u32 %s31, 1
        %s259 = smul.addr %s258, 16
        %s260 = scalar_lea.vmem [#allocation2], %s259
        %p261 = pneg %p44
        %p262 = pneg %p41
        %p263 = pneg %p65
        %p264 = pneg %p62
        %p265 = pneg %p86
        %p266 = pneg %p83
        %p267 = pneg %p107
        %p268 = pneg %p104
        %p269 = pneg %p128
        %p270 = pneg %p125
        %p271 = pneg %p154
        %p272 = pneg %p151
        %s273 = sand.u32 %s141, 1
        %s274 = scalar_lea.sflag [#allocation4], %s273
        %s275 = sand.u32 %s141, 1
        %s276 = smul.addr %s275, 16
        %s277 = scalar_lea.vmem [#allocation8], %s276
        %v278 = vld [vmem:[%s240] sm:$0xff]
        %v279 = vld [vmem:[%s240 + $0x8] sm:$0xff]
        %vm282 = vcmask 1040384
        %v283 = vrot.slane %v278, 7
        %v284 = vrot.slane %v279, 7
        %v285 = vsel %vm282, %v283, %v284
        %v289 = vsel %vm282, 0.0, %v283
        %v290 = vsel %vm282, %v284, 0.0
        %vm293 = vcmask 1046528
        %v294 = vrot.slane %v289, 1
        %v295 = vrot.slane %v285, 1
        %v296 = vsel %vm293, %v294, %v295
        %v297 = vrot.slane %v290, 1
        %v298 = vsel %vm293, %v295, %v297
        %vm301 = vcmask 1045504
        %v302 = vrot.slane %v289, 2
        %v303 = vrot.slane %v285, 2
        %v304 = vsel %vm301, %v302, %v303
        %v305 = vrot.slane %v290, 2
        %v306 = vsel %vm301, %v303, %v305
        %v309 = vpack.c.bf16 %v285, %v289
        %v310 = vpack.c.bf16 %v298, %v296
        %v311 = vpack.c.bf16 %v306, %v304
        %v312 = vld [vmem:[#allocation5] sm:$0xf]
        %v313 = vld [vmem:[#allocation5 + $0x4] sm:$0xf]
        %v314 = vld [vmem:[#allocation5 + $0x8] sm:$0xf]
        %v315 = vld [vmem:[#allocation5 + $0xc] sm:$0xf]
        %v316 = vld [vmem:[#allocation5 + $0x10] sm:$0xf]
        %v317 = vld [vmem:[#allocation5 + $0x14] sm:$0xf]
        %v318 = vld [vmem:[#allocation5 + $0x18] sm:$0xf]
        %v319 = vld [vmem:[#allocation5 + $0x1c] sm:$0xf]
        %v320 = vld [vmem:[#allocation5 + $0x20] sm:$0xf]
        %v321 = vld [vmem:[#allocation5 + $0x24] sm:$0xf]
        %v322 = vld [vmem:[#allocation5 + $0x28] sm:$0xf]
        %v323 = vld [vmem:[#allocation5 + $0x2c] sm:$0xf]
        %v324 = vld [vmem:[#allocation5 + $0x30] sm:$0xf]
        %v325 = vld [vmem:[#allocation5 + $0x34] sm:$0xf]
        %v326 = vld [vmem:[#allocation5 + $0x38] sm:$0xf]
        %v327 = vld [vmem:[#allocation5 + $0x3c] sm:$0xf]
        %v328 = vld [vmem:[#allocation5 + $0x40] sm:$0xf]
        %v329 = vld [vmem:[#allocation5 + $0x44] sm:$0xf]
        %v330 = vld [vmem:[#allocation5 + $0x48] sm:$0xf]
        %v331 = vld [vmem:[#allocation5 + $0x4c] sm:$0xf]
        %v332 = vld [vmem:[#allocation5 + $0x50] sm:$0xf]
        %v333 = vld [vmem:[#allocation5 + $0x54] sm:$0xf]
        %v334 = vld [vmem:[#allocation5 + $0x58] sm:$0xf]
        %v335 = vld [vmem:[#allocation5 + $0x5c] sm:$0xf]
        %v336 = vld [vmem:[#allocation5 + $0x60] sm:$0xf]
        %v337 = vld [vmem:[#allocation5 + $0x64] sm:$0xf]
        %v338 = vld [vmem:[#allocation5 + $0x68] sm:$0xf]
        %v339 = vld [vmem:[#allocation5 + $0x6c] sm:$0xf]
        %v340 = vld [vmem:[#allocation5 + $0x70] sm:$0xf]
        %v341 = vld [vmem:[#allocation5 + $0x74] sm:$0xf]
        %v342 = vld [vmem:[#allocation5 + $0x78] sm:$0xf]
        %v343 = vld [vmem:[#allocation5 + $0x7c] sm:$0xf]
        %v344 = vld [vmem:[#allocation5 + $0x80] sm:$0xf]
        %v345 = vld [vmem:[#allocation5 + $0x84] sm:$0xf]
        %v346 = vld [vmem:[#allocation5 + $0x88] sm:$0xf]
        %v347 = vld [vmem:[#allocation5 + $0x8c] sm:$0xf]
        %v348 = vld [vmem:[#allocation5 + $0x90] sm:$0xf]
        %v349 = vld [vmem:[#allocation5 + $0x94] sm:$0xf]
        %v350 = vld [vmem:[#allocation5 + $0x98] sm:$0xf]
        %v351 = vld [vmem:[#allocation5 + $0x9c] sm:$0xf]
        %v352 = vld [vmem:[#allocation5 + $0xa0] sm:$0xf]
        %v353 = vld [vmem:[#allocation5 + $0xa4] sm:$0xf]
        %v354 = vld [vmem:[#allocation5 + $0xa8] sm:$0xf]
        %v355 = vld [vmem:[#allocation5 + $0xac] sm:$0xf]
        %v356 = vld [vmem:[#allocation5 + $0xb0] sm:$0xf]
        %v357 = vld [vmem:[#allocation5 + $0xb4] sm:$0xf]
        %v358 = vld [vmem:[#allocation5 + $0xb8] sm:$0xf]
        %v359 = vld [vmem:[#allocation5 + $0xbc] sm:$0xf]
        %v360 = vld [vmem:[%s3] sm:$0x1]
        %v362 = vperm.slane %v360, 0
        %v412 = vunpack.c.l.b16 %v312
        %v413 = vunpack.c.l.b16 %v313
        %v414 = vunpack.c.l.b16 %v314
        %v415 = vunpack.c.l.b16 %v315
        %v416 = vunpack.c.l.b16 %v316
        %v417 = vunpack.c.l.b16 %v317
        %v418 = vunpack.c.l.b16 %v318
        %v419 = vunpack.c.l.b16 %v319
        %v420 = vunpack.c.l.b16 %v320
        %v421 = vunpack.c.l.b16 %v321
        %v422 = vunpack.c.l.b16 %v322
        %v423 = vunpack.c.l.b16 %v323
        %v424 = vunpack.c.l.b16 %v324
        %v425 = vunpack.c.l.b16 %v325
        %v426 = vunpack.c.l.b16 %v326
        %v427 = vunpack.c.l.b16 %v327
        %v428 = vunpack.c.l.b16 %v328
        %v429 = vunpack.c.l.b16 %v329
        %v430 = vunpack.c.l.b16 %v330
        %v431 = vunpack.c.l.b16 %v331
        %v432 = vunpack.c.l.b16 %v332
        %v433 = vunpack.c.l.b16 %v333
        %v434 = vunpack.c.l.b16 %v334
        %v435 = vunpack.c.l.b16 %v335
        %v436 = vunpack.c.l.b16 %v336
        %v437 = vunpack.c.l.b16 %v337
        %v438 = vunpack.c.l.b16 %v338
        %v439 = vunpack.c.l.b16 %v339
        %v440 = vunpack.c.l.b16 %v340
        %v441 = vunpack.c.l.b16 %v341
        %v442 = vunpack.c.l.b16 %v342
        %v443 = vunpack.c.l.b16 %v343
        %v444 = vunpack.c.l.b16 %v344
        %v445 = vunpack.c.l.b16 %v345
        %v446 = vunpack.c.l.b16 %v346
        %v447 = vunpack.c.l.b16 %v347
        %v448 = vunpack.c.l.b16 %v348
        %v449 = vunpack.c.l.b16 %v349
        %v450 = vunpack.c.l.b16 %v350
        %v451 = vunpack.c.l.b16 %v351
        %v452 = vunpack.c.l.b16 %v352
        %v453 = vunpack.c.l.b16 %v353
        %v454 = vunpack.c.l.b16 %v354
        %v455 = vunpack.c.l.b16 %v355
        %v456 = vunpack.c.l.b16 %v356
        %v457 = vunpack.c.l.b16 %v357
        %v458 = vunpack.c.l.b16 %v358
        %v459 = vunpack.c.l.b16 %v359
        %v460 = vpack.c.b16 %v413, %v412
        %v461 = vpack.c.b16 %v415, %v414
        %v462 = vpack.c.b16 %v417, %v416
        %v463 = vpack.c.b16 %v419, %v418
        %v464 = vpack.c.b16 %v421, %v420
        %v465 = vpack.c.b16 %v423, %v422
        %v466 = vpack.c.b16 %v425, %v424
        %v467 = vpack.c.b16 %v427, %v426
        %v468 = vpack.c.b16 %v429, %v428
        %v469 = vpack.c.b16 %v431, %v430
        %v470 = vpack.c.b16 %v433, %v432
        %v471 = vpack.c.b16 %v435, %v434
        %v472 = vpack.c.b16 %v437, %v436
        %v473 = vpack.c.b16 %v439, %v438
        %v474 = vpack.c.b16 %v441, %v440
        %v475 = vpack.c.b16 %v443, %v442
        %v476 = vpack.c.b16 %v445, %v444
        %v477 = vpack.c.b16 %v447, %v446
        %v478 = vpack.c.b16 %v449, %v448
        %v479 = vpack.c.b16 %v451, %v450
        %v480 = vpack.c.b16 %v453, %v452
        %v481 = vpack.c.b16 %v455, %v454
        %v482 = vpack.c.b16 %v457, %v456
        %v483 = vpack.c.b16 %v459, %v458
        %508 = vmatpush.bf16.msra.mxu0 %v467
        %509 = vmatpush.bf16.msra.mxu0 %v466
        %510 = vmatpush.bf16.msra.mxu0 %v465
        %511 = vmatpush.bf16.msra.mxu0 %v464
        %512 = vmatpush.bf16.msra.mxu0 %v463
        %513 = vmatpush.bf16.msra.mxu0 %v462
        %514 = vmatpush.bf16.msra.mxu0 %v461
        %515 = vmatpush.bf16.msra.mxu0 %v460
        %516 = vmatmul.bf16.gmra.mxu0 %v309
        %v517 = vpop.f32.mrf.mxu0
        %v518 = vadd.f32 %v362, %v517
        %v519 = vpop.f32.mrf.mxu0
        %v520 = vadd.f32 %v362, %v519
        %521 = vdwg.mxu0
        %522 = vmatpush.bf16.msra.mxu0 %v475
        %523 = vmatpush.bf16.msra.mxu0 %v474
        %524 = vmatpush.bf16.msra.mxu0 %v473
        %525 = vmatpush.bf16.msra.mxu0 %v472
        %526 = vmatpush.bf16.msra.mxu0 %v471
        %527 = vmatpush.bf16.msra.mxu0 %v470
        %528 = vmatpush.bf16.msra.mxu0 %v469
        %529 = vmatpush.bf16.msra.mxu0 %v468
        %530 = vmatmul.bf16.gmra.mxu0 %v310
        %v531 = vpop.f32.mrf.mxu0
        %v532 = vadd.f32 %v518, %v531
        %v533 = vpop.f32.mrf.mxu0
        %v534 = vadd.f32 %v520, %v533
        %535 = vdwg.mxu0
        %536 = vmatpush.bf16.msra.mxu0 %v483
        %537 = vmatpush.bf16.msra.mxu0 %v482
        %538 = vmatpush.bf16.msra.mxu0 %v481
        %539 = vmatpush.bf16.msra.mxu0 %v480
        %540 = vmatpush.bf16.msra.mxu0 %v479
        %541 = vmatpush.bf16.msra.mxu0 %v478
        %542 = vmatpush.bf16.msra.mxu0 %v477
        %543 = vmatpush.bf16.msra.mxu0 %v476
        %544 = vmatmul.bf16.gmra.mxu0 %v311
        %v545 = vpop.f32.mrf.mxu0
        %v546 = vadd.f32 %v532, %v545
        %v547 = vpop.f32.mrf.mxu0
        %v548 = vadd.f32 %v534, %v547
        %549 = vdwg.mxu0
        %v550 = vmax.f32 %v546, 0.0
        %v551 = vmax.f32 %v548, 0.0
        %v554 = vrot.slane %v550, 7
        %v555 = vrot.slane %v551, 7
        %v556 = vsel %vm282, %v554, %v555
        %v560 = vsel %vm282, 0.0, %v554
        %v561 = vsel %vm282, %v555, 0.0
        %v564 = vrot.slane %v560, 1
        %v565 = vrot.slane %v556, 1
        %v566 = vsel %vm293, %v564, %v565
        %v567 = vrot.slane %v561, 1
        %v568 = vsel %vm293, %v565, %v567
        %v571 = vrot.slane %v560, 2
        %v572 = vrot.slane %v556, 2
        %v573 = vsel %vm301, %v571, %v572
        %v574 = vrot.slane %v561, 2
        %v575 = vsel %vm301, %v572, %v574
        %v578 = vpack.c.bf16 %v556, %v560
        %v579 = vpack.c.bf16 %v568, %v566
        %v580 = vpack.c.bf16 %v575, %v573
        %v581 = vld [vmem:[#allocation7] sm:$0xf]
        %v582 = vld [vmem:[#allocation7 + $0x4] sm:$0xf]
        %v583 = vld [vmem:[#allocation7 + $0x8] sm:$0xf]
        %v584 = vld [vmem:[#allocation7 + $0xc] sm:$0xf]
        %v585 = vld [vmem:[#allocation7 + $0x10] sm:$0xf]
        %v586 = vld [vmem:[#allocation7 + $0x14] sm:$0xf]
        %v587 = vld [vmem:[#allocation7 + $0x18] sm:$0xf]
        %v588 = vld [vmem:[#allocation7 + $0x1c] sm:$0xf]
        %v589 = vld [vmem:[#allocation7 + $0x20] sm:$0xf]
        %v590 = vld [vmem:[#allocation7 + $0x24] sm:$0xf]
        %v591 = vld [vmem:[#allocation7 + $0x28] sm:$0xf]
        %v592 = vld [vmem:[#allocation7 + $0x2c] sm:$0xf]
        %v593 = vld [vmem:[#allocation7 + $0x30] sm:$0xf]
        %v594 = vld [vmem:[#allocation7 + $0x34] sm:$0xf]
        %v595 = vld [vmem:[#allocation7 + $0x38] sm:$0xf]
        %v596 = vld [vmem:[#allocation7 + $0x3c] sm:$0xf]
        %v597 = vld [vmem:[#allocation7 + $0x40] sm:$0xf]
        %v598 = vld [vmem:[#allocation7 + $0x44] sm:$0xf]
        %v599 = vld [vmem:[#allocation7 + $0x48] sm:$0xf]
        %v600 = vld [vmem:[#allocation7 + $0x4c] sm:$0xf]
        %v601 = vld [vmem:[#allocation7 + $0x50] sm:$0xf]
        %v602 = vld [vmem:[#allocation7 + $0x54] sm:$0xf]
        %v603 = vld [vmem:[#allocation7 + $0x58] sm:$0xf]
        %v604 = vld [vmem:[#allocation7 + $0x5c] sm:$0xf]
        %v605 = vld [vmem:[#allocation7 + $0x60] sm:$0xf]
        %v606 = vld [vmem:[#allocation7 + $0x64] sm:$0xf]
        %v607 = vld [vmem:[#allocation7 + $0x68] sm:$0xf]
        %v608 = vld [vmem:[#allocation7 + $0x6c] sm:$0xf]
        %v609 = vld [vmem:[#allocation7 + $0x70] sm:$0xf]
        %v610 = vld [vmem:[#allocation7 + $0x74] sm:$0xf]
        %v611 = vld [vmem:[#allocation7 + $0x78] sm:$0xf]
        %v612 = vld [vmem:[#allocation7 + $0x7c] sm:$0xf]
        %v613 = vld [vmem:[#allocation7 + $0x80] sm:$0xf]
        %v614 = vld [vmem:[#allocation7 + $0x84] sm:$0xf]
        %v615 = vld [vmem:[#allocation7 + $0x88] sm:$0xf]
        %v616 = vld [vmem:[#allocation7 + $0x8c] sm:$0xf]
        %v617 = vld [vmem:[#allocation7 + $0x90] sm:$0xf]
        %v618 = vld [vmem:[#allocation7 + $0x94] sm:$0xf]
        %v619 = vld [vmem:[#allocation7 + $0x98] sm:$0xf]
        %v620 = vld [vmem:[#allocation7 + $0x9c] sm:$0xf]
        %v621 = vld [vmem:[#allocation7 + $0xa0] sm:$0xf]
        %v622 = vld [vmem:[#allocation7 + $0xa4] sm:$0xf]
        %v623 = vld [vmem:[#allocation7 + $0xa8] sm:$0xf]
        %v624 = vld [vmem:[#allocation7 + $0xac] sm:$0xf]
        %v625 = vld [vmem:[#allocation7 + $0xb0] sm:$0xf]
        %v626 = vld [vmem:[#allocation7 + $0xb4] sm:$0xf]
        %v627 = vld [vmem:[#allocation7 + $0xb8] sm:$0xf]
        %v628 = vld [vmem:[#allocation7 + $0xbc] sm:$0xf]
        %v629 = vld [vmem:[%s4] sm:$0x1]
        %v631 = vperm.slane %v629, 0
        %v681 = vunpack.c.l.b16 %v581
        %v682 = vunpack.c.l.b16 %v582
        %v683 = vunpack.c.l.b16 %v583
        %v684 = vunpack.c.l.b16 %v584
        %v685 = vunpack.c.l.b16 %v585
        %v686 = vunpack.c.l.b16 %v586
        %v687 = vunpack.c.l.b16 %v587
        %v688 = vunpack.c.l.b16 %v588
        %v689 = vunpack.c.l.b16 %v589
        %v690 = vunpack.c.l.b16 %v590
        %v691 = vunpack.c.l.b16 %v591
        %v692 = vunpack.c.l.b16 %v592
        %v693 = vunpack.c.l.b16 %v593
        %v694 = vunpack.c.l.b16 %v594
        %v695 = vunpack.c.l.b16 %v595
        %v696 = vunpack.c.l.b16 %v596
        %v697 = vunpack.c.l.b16 %v597
        %v698 = vunpack.c.l.b16 %v598
        %v699 = vunpack.c.l.b16 %v599
        %v700 = vunpack.c.l.b16 %v600
        %v701 = vunpack.c.l.b16 %v601
        %v702 = vunpack.c.l.b16 %v602
        %v703 = vunpack.c.l.b16 %v603
        %v704 = vunpack.c.l.b16 %v604
        %v705 = vunpack.c.l.b16 %v605
        %v706 = vunpack.c.l.b16 %v606
        %v707 = vunpack.c.l.b16 %v607
        %v708 = vunpack.c.l.b16 %v608
        %v709 = vunpack.c.l.b16 %v609
        %v710 = vunpack.c.l.b16 %v610
        %v711 = vunpack.c.l.b16 %v611
        %v712 = vunpack.c.l.b16 %v612
        %v713 = vunpack.c.l.b16 %v613
        %v714 = vunpack.c.l.b16 %v614
        %v715 = vunpack.c.l.b16 %v615
        %v716 = vunpack.c.l.b16 %v616
        %v717 = vunpack.c.l.b16 %v617
        %v718 = vunpack.c.l.b16 %v618
        %v719 = vunpack.c.l.b16 %v619
        %v720 = vunpack.c.l.b16 %v620
        %v721 = vunpack.c.l.b16 %v621
        %v722 = vunpack.c.l.b16 %v622
        %v723 = vunpack.c.l.b16 %v623
        %v724 = vunpack.c.l.b16 %v624
        %v725 = vunpack.c.l.b16 %v625
        %v726 = vunpack.c.l.b16 %v626
        %v727 = vunpack.c.l.b16 %v627
        %v728 = vunpack.c.l.b16 %v628
        %v729 = vpack.c.b16 %v682, %v681
        %v730 = vpack.c.b16 %v684, %v683
        %v731 = vpack.c.b16 %v686, %v685
        %v732 = vpack.c.b16 %v688, %v687
        %v733 = vpack.c.b16 %v690, %v689
        %v734 = vpack.c.b16 %v692, %v691
        %v735 = vpack.c.b16 %v694, %v693
        %v736 = vpack.c.b16 %v696, %v695
        %v737 = vpack.c.b16 %v698, %v697
        %v738 = vpack.c.b16 %v700, %v699
        %v739 = vpack.c.b16 %v702, %v701
        %v740 = vpack.c.b16 %v704, %v703
        %v741 = vpack.c.b16 %v706, %v705
        %v742 = vpack.c.b16 %v708, %v707
        %v743 = vpack.c.b16 %v710, %v709
        %v744 = vpack.c.b16 %v712, %v711
        %v745 = vpack.c.b16 %v714, %v713
        %v746 = vpack.c.b16 %v716, %v715
        %v747 = vpack.c.b16 %v718, %v717
        %v748 = vpack.c.b16 %v720, %v719
        %v749 = vpack.c.b16 %v722, %v721
        %v750 = vpack.c.b16 %v724, %v723
        %v751 = vpack.c.b16 %v726, %v725
        %v752 = vpack.c.b16 %v728, %v727
        %777 = vmatpush.bf16.msra.mxu0 %v736
        %778 = vmatpush.bf16.msra.mxu0 %v735
        %779 = vmatpush.bf16.msra.mxu0 %v734
        %780 = vmatpush.bf16.msra.mxu0 %v733
        %781 = vmatpush.bf16.msra.mxu0 %v732
        %782 = vmatpush.bf16.msra.mxu0 %v731
        %783 = vmatpush.bf16.msra.mxu0 %v730
        %784 = vmatpush.bf16.msra.mxu0 %v729
        %785 = vmatmul.bf16.gmra.mxu0 %v578
        %v786 = vpop.f32.mrf.mxu0
        %v787 = vadd.f32 %v631, %v786
        %v788 = vpop.f32.mrf.mxu0
        %v789 = vadd.f32 %v631, %v788
        %790 = vdwg.mxu0
        %791 = vmatpush.bf16.msra.mxu0 %v744
        %792 = vmatpush.bf16.msra.mxu0 %v743
        %793 = vmatpush.bf16.msra.mxu0 %v742
        %794 = vmatpush.bf16.msra.mxu0 %v741
        %795 = vmatpush.bf16.msra.mxu0 %v740
        %796 = vmatpush.bf16.msra.mxu0 %v739
        %797 = vmatpush.bf16.msra.mxu0 %v738
        %798 = vmatpush.bf16.msra.mxu0 %v737
        %799 = vmatmul.bf16.gmra.mxu0 %v579
        %v800 = vpop.f32.mrf.mxu0
        %v801 = vadd.f32 %v787, %v800
        %v802 = vpop.f32.mrf.mxu0
        %v803 = vadd.f32 %v789, %v802
        %804 = vdwg.mxu0
        %805 = vmatpush.bf16.msra.mxu0 %v752
        %806 = vmatpush.bf16.msra.mxu0 %v751
        %807 = vmatpush.bf16.msra.mxu0 %v750
        %808 = vmatpush.bf16.msra.mxu0 %v749
        %809 = vmatpush.bf16.msra.mxu0 %v748
        %810 = vmatpush.bf16.msra.mxu0 %v747
        %811 = vmatpush.bf16.msra.mxu0 %v746
        %812 = vmatpush.bf16.msra.mxu0 %v745
        %813 = vmatmul.bf16.gmra.mxu0 %v580
        %v814 = vpop.f32.mrf.mxu0
        %v815 = vadd.f32 %v801, %v814
        %v816 = vpop.f32.mrf.mxu0
        %v817 = vadd.f32 %v803, %v816
        %818 = vdwg.mxu0
        %v819 = vadd.f32 %v815, %v278
        %v820 = vadd.f32 %v817, %v279
        %v821 = vmax.f32 %v819, 0.0
        %v822 = vmax.f32 %v820, 0.0
        %823 = vst [vmem:[%s277] sm:$0xff] %v821
        %824 = vst [vmem:[%s277 + $0x8] sm:$0xff] %v822
        %s825 = sand.u32 %s141, 1
        %s826 = scalar_lea.sflag [#allocation4], %s825
        %s827 = sand.u32 %s141, 1
        %s828 = smul.addr %s827, 16
        %s829 = scalar_lea.vmem [#allocation8], %s828
        // Predicated region
        $region53: #{tpu_custom_call.1} parent=39 // pred_check
          %p830 = pneg %p151
        $region54: #{tpu_custom_call.1} parent=39 // pred_check_branch
          %832 = sbr.rel (%p830) target = $region56
        $region55: #{tpu_custom_call.1} parent=39 // pred_region
          %834 = vsyncadd %s826, 0
          %s835 = smul.addr %s23, 2
          %s836 = smul.addr %s835, 8
          %s837 = scalar_lea.hbm %s5, %s836
          %s838 = sshll.u32 %s829, 4
          %s839 = int_to_ptr.vmem [resolvable:$true] %s838
          %s840 = sshll.u32 %s837, 4
          %s841 = int_to_ptr.hbm [resolvable:$true] %s840
          %846 = dma.vmem_to_hbm [thread:$0]  %s839, 256, %s841, %s826, 128, 128, 8
        $region56: #{tpu_custom_call.1} parent=39 // pred_fallthru
          _
      $region40: #{tpu_custom_call.1} parent=5 // pred_fallthru
        _
      %p847 = scmp.le.s32.totalorder 2, %s18
      // Predicated region
      $region57: #{tpu_custom_call.1} parent=5 // pred_check
        %p848 = pneg %p847
      $region58: #{tpu_custom_call.1} parent=5 // pred_check_branch
        %850 = sbr.rel (%p848) target = $region60
      $region59: #{tpu_custom_call.1} parent=5 // pred_region
        %s851 = ssub.s32 %s18, 2
        // Predicated region
        $region61: #{tpu_custom_call.1} parent=59 // pred_check
          %p852 = pneg %p157
        $region62: #{tpu_custom_call.1} parent=59 // pred_check_branch
          %854 = sbr.rel (%p852) target = $region64
        $region63: #{tpu_custom_call.1} parent=59 // pred_region
          %s855 = sand.u32 %s142, 1
          %s856 = scalar_lea.sflag [#allocation4], %s855
          %s857 = sand.u32 %s142, 1
          %s858 = smul.addr %s857, 16
          %s859 = scalar_lea.vmem [#allocation8], %s858
          %861 = dma.done %s856, 256
        $region64: #{tpu_custom_call.1} parent=59 // pred_fallthru
          _
      $region60: #{tpu_custom_call.1} parent=5 // pred_fallthru
        _
    $region6: #{tpu_custom_call.1} parent=1 // loop_footer
      %s22 = sadd.s32 1, %s18
    $region7: #{tpu_custom_call.1} parent=1 // loop_footer_branch
      %17 = sbr.rel target = $region3
    $region8: #{tpu_custom_call.1} parent=1 // loop_exit
      _
    %862 = vsyncpa [#allocation3], 1
    %s863 = scalar_lea.sflag [#allocation3], 1
    %864 = vsyncpa %s863, 1
    %865 = vsyncpa [#allocation6], 1
    %866 = vsyncpa [#allocation4], 1
    %s867 = scalar_lea.sflag [#allocation4], 1
    %868 = vsyncpa %s867, 1

</llo_original>
